<compile_context>
chip_gen: v6e
topology: v6e:2x2x1
jax: 0.10.0
libtpu: 0.0.40
codegen_flags: <defaults>
</compile_context>

<pallas_src>
import functools

import jax
import jax.numpy as jnp
from jax.experimental import pallas as pl
from jax.experimental.pallas import tpu as pltpu

# --- module-consistent test configuration (scaled down from the defaults) ---
L = 4           # input_layers
B = 2           # batch
C_IN = 8        # channels of each input feature map
H = W = 16      # target spatial size (module default 12x12 also works: a full
                # H*W extent block is legal even when it is not a 128-multiple)
MID = 16        # mid_channel
COMP = 32       # compression_out_channels == input_dim == output_dim
LATENT = 16     # latent_dim
CLASSES = 10    # class_nums
DROP_P = 0.3
R = 0.8         # r in rvae.get_rec_loss(out, r=0.8)
MAX_TILE_HW = 2048   # pixel-tile upper bound; sweep per generation


# ----------------------------- kernel A: streaming conv + pool ---------------
def conv_pool_kernel(fm_ref, wconv_ref, bconv_ref, pooled_ref):
    """One (batch b, pixel-tile t) grid step.

    fm_ref:     (L, 1, C_IN, TILE) f32   pixel tile of the layer feature maps
    wconv_ref:  (L*MID, L*C_IN)    bf16  block-diagonal fused 1x1 convs
    bconv_ref:  (L*MID, 1)         f32
    pooled_ref: (1, L*MID, 1)      f32   per-batch pooled-sum accumulator
    """
    t = pl.program_id(1)

    @pl.when(t == 0)
    def _init():
        pooled_ref[...] = jnp.zeros_like(pooled_ref)

    n_l, _, c_in, tile = fm_ref.shape
    # Layout-preserving collapse (C_IN is sublane-aligned): (L,1,C,T)->(L*C,T).
    fm = fm_ref[...].reshape(n_l * c_in, tile).astype(jnp.bfloat16)
    f = jnp.dot(wconv_ref[...], fm, preferred_element_type=jnp.float32)
    f = jnp.maximum(f + bconv_ref[...], 0.0)               # (L*MID, TILE)

    # Global average pooling (sums here; divided by H*W in the finalize kernel).
    # TODO(synk): at very large TILE move this lane reduction onto the MXU
    # (dot with a ones column) if the XLU slot ever becomes the busiest unit.
    part = jnp.sum(f, axis=-1, keepdims=True)               # (L*MID, 1)
    pooled_ref[...] += part[None]                           # (1, L*MID, 1)


# ----------------------------- kernel B: one-shot finalize -------------------
def finalize_kernel(pooled_ref, x_ref, eps_ref, mask1_ref, mask2_ref,
                    watt_ref, batt_ref, wcomp_ref, bcomp_ref,
                    wmu_ref, bmu_ref, wlv_ref, blv_ref,
                    wdec_ref, bdec_ref, wh1_ref, bh1_ref, wh2_ref, bh2_ref,
                    y1_ref, y2_ref, loss_ref, *, inv_hw, r):
    """Layer attention + compression conv + RVAE loss + dropout + both heads.

    Batch-major layout everywhere (B on sublanes) -- the whole stage is tiny
    and runs exactly once, so lane density / operand count here is irrelevant.
    """
    pooled = pooled_ref[...] * inv_hw                       # (B, L, MID) means

    # layer attention (softmax over layers) -- VPU/XLU only
    score = jnp.sum(pooled * watt_ref[...], axis=-1, keepdims=True)  # (B, L, 1)
    score = score + batt_ref[...]
    score = score - jnp.max(score, axis=1, keepdims=True)
    e = jnp.exp(score)
    alpha = e / jnp.sum(e, axis=1, keepdims=True)           # (B, L, 1)

    fused = jnp.sum(alpha * pooled, axis=1)                 # (B, MID)

    # compression 1x1 conv on pooled means == conv1x1 + adaptive-avg-pool(1)
    trilli = jnp.dot(fused, wcomp_ref[...],
                     preferred_element_type=jnp.float32) + bcomp_ref[...]

    # ------------------ RVAE.get_rec_loss (synthesized) ----------------------
    x = x_ref[...]                                          # (B, COMP)
    mu = jnp.dot(x, wmu_ref[...], preferred_element_type=jnp.float32) + bmu_ref[...]
    logvar = jnp.dot(x, wlv_ref[...], preferred_element_type=jnp.float32) + blv_ref[...]
    std = jnp.exp(0.5 * logvar)
    z = mu + std * eps_ref[...]                             # (B, LATENT)
    rec = jnp.dot(z, wdec_ref[...], preferred_element_type=jnp.float32) + bdec_ref[...]

    rec_loss = jnp.mean((rec - x) ** 2)
    kl = -0.5 * jnp.mean(1.0 + logvar - mu * mu - jnp.exp(logvar))
    vae_loss = r * rec_loss + (1.0 - r) * kl

    # -------------- dropout (pre-scaled masks) + both classifier heads -------
    y1_ref[...] = jnp.dot(trilli * mask1_ref[...], wh1_ref[...],
                          preferred_element_type=jnp.float32) + bh1_ref[...]
    y2_ref[...] = jnp.dot(rec * mask2_ref[...], wh2_ref[...],
                          preferred_element_type=jnp.float32) + bh2_ref[...]
    loss_ref[...] = jnp.broadcast_to(vae_loss, (1, 1))


# ----------------------- parameters (PyTorch-shaped) -------------------------
def make_params(key):
    ks = jax.random.split(key, 8)
    s = 0.05
    return {
        "wl":    jax.random.normal(ks[0], (L, C_IN, MID), jnp.float32) * s,
        "bl":    jnp.zeros((L, MID), jnp.float32),
        "watt":  jax.random.normal(ks[1], (MID, 1), jnp.float32) * s,
        "batt":  jnp.zeros((1, 1), jnp.float32),
        "wcomp": jax.random.normal(ks[2], (MID, COMP), jnp.float32) * s,
        "bcomp": jnp.zeros((1, COMP), jnp.float32),
        "wmu":   jax.random.normal(ks[3], (COMP, LATENT), jnp.float32) * s,
        "bmu":   jnp.zeros((1, LATENT), jnp.float32),
        "wlv":   jax.random.normal(ks[4], (COMP, LATENT), jnp.float32) * s,
        "blv":   jnp.zeros((1, LATENT), jnp.float32),
        "wdec":  jax.random.normal(ks[5], (LATENT, COMP), jnp.float32) * s,
        "bdec":  jnp.zeros((1, COMP), jnp.float32),
        "wh1":   jax.random.normal(ks[6], (COMP, CLASSES), jnp.float32) * s,
        "bh1":   jnp.zeros((1, CLASSES), jnp.float32),
        "wh2":   jax.random.normal(ks[7], (COMP, CLASSES), jnp.float32) * s,
        "bh2":   jnp.zeros((1, CLASSES), jnp.float32),
    }


def _fused_conv_weights(wl, bl, conv_dtype=jnp.bfloat16):
    """Block-diagonal fusion of the L per-layer 1x1 convs into one MXU matmul.

    TODO(synk): at L >= 8 switch to an unrolled per-layer loop (or a 'layer'
    grid axis) instead of growing an O(L^2), 75%-zero block-diagonal LHS.
    """
    n_l, c_in, mid = wl.shape
    w_bd = jnp.zeros((n_l * mid, n_l * c_in), jnp.float32)
    for l in range(n_l):
        w_bd = w_bd.at[l * mid:(l + 1) * mid, l * c_in:(l + 1) * c_in].set(wl[l].T)
    return w_bd.astype(conv_dtype), bl.reshape(n_l * mid, 1).astype(jnp.float32)


def _pick_tile(hw, max_tile=MAX_TILE_HW):
    """Largest legal pixel tile: full H*W extent if it fits (covers the module
    default 12x12 and the toy size), else the largest 128-multiple divisor."""
    if hw <= max_tile:
        return hw
    for t in (2048, 1024, 512, 256, 128):
        if t <= max_tile and hw % t == 0:
            return t
    # TODO(synk): for awkward large spatial sizes, pad H*W to a 128 multiple
    # and mask the padded lanes before the pooled reduce.
    return hw


# ------------------------------- wrapper --------------------------------------
def feature_refine(feature_maps, out, params, eps, mask1, mask2, *, r=R,
                   max_tile=MAX_TILE_HW):
    """feature_maps: (L, B, C_IN, H, W) f32 (NCHW per layer, PyTorch layout).
    out: (B, COMP) f32. eps / mask1 / mask2: host-generated reparameterization
    noise and pre-scaled (1/(1-p)) train-mode dropout masks."""
    n_l, bsz, c_in, h, w = feature_maps.shape
    hw = h * w
    tile_hw = _pick_tile(hw, max_tile)
    tiles_per_batch = hw // tile_hw

    mid = params["wl"].shape[2]
    classes = params["wh1"].shape[1]
    lmid = n_l * mid

    wconv, bconv = _fused_conv_weights(params["wl"], params["bl"])

    # Free reshape (merges trailing dims, no copy): the big tensor is read by
    # the kernel straight from its NCHW layout -- no wrapper transpose / cast.
    # TODO(synk): if the producer can emit (L*C_IN, B*H*W) bf16 directly (or
    # fp8 on v7x with scales folded into wconv), fm HBM traffic halves again.
    fm4 = feature_maps.reshape(n_l, bsz, c_in, hw)

    # VMEM budget: double-buffered f32 fm tile + fused weights + the f32 conv
    # intermediate; clamped to 48 MiB so the same tile sweep stays legal on
    # v7x (64 MiB physical). On v5e/v6e this can be raised towards ~100 MiB
    # together with a larger max_tile.
    fm_tile_bytes = n_l * c_in * tile_hw * 4
    inter_bytes = lmid * tile_hw * 4
    vmem_need = 2 * fm_tile_bytes + 2 * inter_bytes + 2 * wconv.size * 2 + (2 << 20)
    vmem_limit = int(min(max(vmem_need, 32 * 1024 * 1024), 48 * 1024 * 1024))

    pooled = pl.pallas_call(
        conv_pool_kernel,
        out_shape=jax.ShapeDtypeStruct((bsz, lmid, 1), jnp.float32),
        grid_spec=pltpu.PrefetchScalarGridSpec(
            num_scalar_prefetch=0,
            grid=(bsz, tiles_per_batch),
            in_specs=[
                pl.BlockSpec((n_l, 1, c_in, tile_hw), lambda b, t: (0, b, 0, t)),
                pl.BlockSpec(wconv.shape, lambda b, t: (0, 0)),
                pl.BlockSpec(bconv.shape, lambda b, t: (0, 0)),
            ],
            out_specs=pl.BlockSpec((1, lmid, 1), lambda b, t: (b, 0, 0)),
        ),
        compiler_params=pltpu.CompilerParams(
            # batch axis "parallel" -> both TensorCores on v7x (no-op on
            # v5e/v6e); pixel-tile axis carries the accumulator -> "arbitrary".
            dimension_semantics=("parallel", "arbitrary"),
            vmem_limit_bytes=vmem_limit),
        # TODO(synk): if profiling ever shows exposed fm DMA at large tiles,
        # add pipeline_mode=pl.Buffered(3) on the fm BlockSpec.
    )(fm4, wconv, bconv)

    # Tiny (B*L*MID f32 = a few hundred bytes) relayout for the finalize call.
    pooled_lm = pooled.reshape(bsz, n_l, mid)

    small_ins = (
        pooled_lm,
        out.astype(jnp.float32),
        eps.astype(jnp.float32),
        mask1.astype(jnp.float32),
        mask2.astype(jnp.float32),
        params["watt"].reshape(1, 1, mid),
        params["batt"].reshape(1, 1, 1),
        params["wcomp"], params["bcomp"],
        params["wmu"], params["bmu"],
        params["wlv"], params["blv"],
        params["wdec"], params["bdec"],
        params["wh1"], params["bh1"],
        params["wh2"], params["bh2"],
    )

    def _full(a):
        return pl.BlockSpec(a.shape, lambda i: (0,) * a.ndim)

    y1, y2, loss = pl.pallas_call(
        functools.partial(finalize_kernel, inv_hw=1.0 / hw, r=r),
        out_shape=(jax.ShapeDtypeStruct((bsz, classes), jnp.float32),
                   jax.ShapeDtypeStruct((bsz, classes), jnp.float32),
                   jax.ShapeDtypeStruct((1, 1), jnp.float32)),
        grid_spec=pltpu.PrefetchScalarGridSpec(
            num_scalar_prefetch=0,
            grid=(1,),
            in_specs=[_full(a) for a in small_ins],
            out_specs=(pl.BlockSpec((bsz, classes), lambda i: (0, 0)),
                       pl.BlockSpec((bsz, classes), lambda i: (0, 0)),
                       pl.BlockSpec((1, 1), lambda i: (0, 0))),
        ),
    )(*small_ins)

    return y1, y2, loss[0, 0]


# --------------------- pure-JAX f32 reference (validation) -------------------
def feature_refine_reference(feature_maps, out, params, eps, mask1, mask2, r=R):
    n_l, bsz, c_in, h, w = feature_maps.shape
    fm = feature_maps.reshape(n_l, bsz, c_in, h * w)
    pooled = []
    for l in range(n_l):
        f = jnp.einsum("bcp,cm->bmp", fm[l], params["wl"][l])
        f = jnp.maximum(f + params["bl"][l][None, :, None], 0.0)
        pooled.append(jnp.mean(f, axis=-1))                        # (B, MID)
    pooled = jnp.stack(pooled, axis=1)                             # (B, L, MID)
    score = jnp.einsum("blm,mo->bl", pooled, params["watt"]) + params["batt"][0, 0]
    alpha = jax.nn.softmax(score, axis=-1)
    fused = jnp.einsum("bl,blm->bm", alpha, pooled)
    trilli = fused @ params["wcomp"] + params["bcomp"]
    x = out
    mu = x @ params["wmu"] + params["bmu"]
    logvar = x @ params["wlv"] + params["blv"]
    z = mu + jnp.exp(0.5 * logvar) * eps
    rec = z @ params["wdec"] + params["bdec"]
    rec_loss = jnp.mean((rec - x) ** 2)
    kl = -0.5 * jnp.mean(1.0 + logvar - mu * mu - jnp.exp(logvar))
    vae_loss = r * rec_loss + (1.0 - r) * kl
    y1 = (trilli * mask1) @ params["wh1"] + params["bh1"]
    y2 = (rec * mask2) @ params["wh2"] + params["bh2"]
    return y1, y2, vae_loss


if __name__ == "__main__":
    key = jax.random.PRNGKey(0)
    k_fm, k_out, k_eps, k_m1, k_m2, k_par = jax.random.split(key, 6)

    feature_maps = jax.random.normal(k_fm, (L, B, C_IN, H, W), jnp.float32)
    out_vec = jax.random.normal(k_out, (B, COMP), jnp.float32)
    params = make_params(k_par)

    # Dropout / reparameterization RNG generated host-side (deterministic) and
    # consumed in-kernel (train-mode dropout, masks pre-scaled by 1/(1-p)).
    eps = jax.random.normal(k_eps, (B, LATENT), jnp.float32)
    mask1 = (jax.random.uniform(k_m1, (B, COMP)) >= DROP_P).astype(jnp.float32) / (1.0 - DROP_P)
    mask2 = (jax.random.uniform(k_m2, (B, COMP)) >= DROP_P).astype(jnp.float32) / (1.0 - DROP_P)

    y1, y2, vae_loss = feature_refine(feature_maps, out_vec, params,
                                      eps, mask1, mask2)
    jax.block_until_ready((y1, y2, vae_loss))

    y1_ref, y2_ref, loss_ref = feature_refine_reference(
        feature_maps, out_vec, params, eps, mask1, mask2)

    assert y1.shape == (B, CLASSES) and y2.shape == (B, CLASSES)
    assert vae_loss.shape == ()
    assert bool(jnp.all(jnp.isfinite(y1))) and bool(jnp.all(jnp.isfinite(y2)))
    assert bool(jnp.isfinite(vae_loss))
    # bf16 conv path vs f32 reference: loose but meaningful tolerances.
    assert bool(jnp.allclose(y1, y1_ref, rtol=5e-2, atol=5e-3)), "y1 mismatch"
    assert bool(jnp.allclose(y2, y2_ref, rtol=5e-2, atol=5e-3)), "y2 mismatch"
    assert bool(jnp.allclose(vae_loss, loss_ref, rtol=1e-3, atol=1e-5)), "loss mismatch"
    print("KERNEL_OK")
</pallas_src>

<mosaic_0001>
module attributes {stable_mosaic.version = 11 : i64} {
  func.func @conv_pool_kernel(%arg0: i32, %arg1: i32, %arg2: memref<4x1x8x256xf32, #tpu.memory_space<vmem>>, %arg3: memref<64x32xbf16, #tpu.memory_space<vmem>>, %arg4: memref<64x1xf32, #tpu.memory_space<vmem>>, %arg5: memref<1x64x1xf32, #tpu.memory_space<vmem>>) attributes {dimension_semantics = [#tpu.dimension_semantics<parallel>, #tpu.dimension_semantics<arbitrary>], iteration_bounds = array<i64: 2, 1>, scalar_prefetch = 0 : i64, scratch_operands = 0 : i64, tpu.core_type = #tpu.core_type<tc>, window_params = [{transform_indices = @transform_0, window_bounds = array<i64: 4, 1, 8, 256>}, {pipeline_mode = #tpu.pipeline_mode<synchronous>, transform_indices = @transform_1, window_bounds = array<i64: 64, 32>}, {pipeline_mode = #tpu.pipeline_mode<synchronous>, transform_indices = @transform_2, window_bounds = array<i64: 64, 1>}, {transform_indices = @transform_3, window_bounds = array<i64: 1, 64, 1>}]} {
    %c0_i32 = arith.constant 0 : i32
    %0 = arith.cmpi eq, %arg1, %c0_i32 : i32
    %1 = arith.extui %0 : i1 to i32
    %c0_i32_0 = arith.constant 0 : i32
    %2 = arith.cmpi ne, %1, %c0_i32_0 : i32
    scf.if %2 {
      %cst_16 = arith.constant 0.000000e+00 : f32
      %19 = vector.broadcast %cst_16 : f32 to vector<1x64x1xf32>
      %c0_17 = arith.constant 0 : index
      %c0_18 = arith.constant 0 : index
      %c0_19 = arith.constant 0 : index
      %20 = vector.load %arg5[%c0_17, %c0_18, %c0_19] : memref<1x64x1xf32, #tpu.memory_space<vmem>>, vector<1x64x1xf32>
      tpu.vector_store %arg5[%c0_17, %c0_18, %c0_19], %19 {strides = array<i32>} : memref<1x64x1xf32, #tpu.memory_space<vmem>>, vector<1x64x1xf32>,
    } else {
    }
    %c0 = arith.constant 0 : index
    %c0_1 = arith.constant 0 : index
    %c0_2 = arith.constant 0 : index
    %c0_3 = arith.constant 0 : index
    %3 = vector.load %arg2[%c0, %c0_1, %c0_2, %c0_3] : memref<4x1x8x256xf32, #tpu.memory_space<vmem>>, vector<4x1x8x256xf32>
    %4 = vector.shape_cast %3 : vector<4x1x8x256xf32> to vector<32x256xf32>
    %5 = arith.truncf %4 : vector<32x256xf32> to vector<32x256xbf16>
    %c0_4 = arith.constant 0 : index
    %c0_5 = arith.constant 0 : index
    %6 = vector.load %arg3[%c0_4, %c0_5] : memref<64x32xbf16, #tpu.memory_space<vmem>>, vector<64x32xbf16>
    %cst = arith.constant dense<0.000000e+00> : vector<64x256xf32>
    %7 = tpu.matmul %6, %5, %cst {dimension_numbers = #tpu.dot_dimension_numbers<[1], [0], [0], [1], [0, 0, 1, 1], [], []>} : vector<64x32xbf16>, vector<32x256xbf16>, vector<64x256xf32> -> vector<64x256xf32>
    %c0_6 = arith.constant 0 : index
    %c0_7 = arith.constant 0 : index
    %8 = vector.load %arg4[%c0_6, %c0_7] : memref<64x1xf32, #tpu.memory_space<vmem>>, vector<64x1xf32>
    %9 = vector.broadcast %8 : vector<64x1xf32> to vector<64x256xf32>
    %10 = arith.addf %7, %9 : vector<64x256xf32>
    %cst_8 = arith.constant 0.000000e+00 : f32
    %11 = vector.broadcast %cst_8 : f32 to vector<64x256xf32>
    %12 = arith.maximumf %10, %11 : vector<64x256xf32>
    %cst_9 = arith.constant dense<0.000000e+00> : vector<64xf32>
    %13 = vector.multi_reduction <add>, %12, %cst_9 [1] : vector<64x256xf32> to vector<64xf32>
    %14 = vector.shape_cast %13 : vector<64xf32> to vector<64x1xf32>
    %c0_10 = arith.constant 0 : index
    %c0_11 = arith.constant 0 : index
    %c0_12 = arith.constant 0 : index
    %15 = vector.load %arg5[%c0_10, %c0_11, %c0_12] : memref<1x64x1xf32, #tpu.memory_space<vmem>>, vector<1x64x1xf32>
    %16 = vector.shape_cast %14 : vector<64x1xf32> to vector<1x64x1xf32>
    %17 = arith.addf %15, %16 : vector<1x64x1xf32>
    %c0_13 = arith.constant 0 : index
    %c0_14 = arith.constant 0 : index
    %c0_15 = arith.constant 0 : index
    %18 = vector.load %arg5[%c0_13, %c0_14, %c0_15] : memref<1x64x1xf32, #tpu.memory_space<vmem>>, vector<1x64x1xf32>
    tpu.vector_store %arg5[%c0_13, %c0_14, %c0_15], %17 {strides = array<i32>} : memref<1x64x1xf32, #tpu.memory_space<vmem>>, vector<1x64x1xf32>,
    return
  }
  func.func @transform_0(%arg0: i32, %arg1: i32) -> (i32, i32, i32, i32) {
    %c0_i32 = arith.constant 0 : i32
    %c0_i32_0 = arith.constant 0 : i32
    %c0_i32_1 = arith.constant 0 : i32
    return %c0_i32, %arg0, %c0_i32_0, %arg1 : i32, i32, i32, i32
  }
  func.func @transform_1(%arg0: i32, %arg1: i32) -> (i32, i32) {
    %c0_i32 = arith.constant 0 : i32
    %c0_i32_0 = arith.constant 0 : i32
    %c0_i32_1 = arith.constant 0 : i32
    return %c0_i32, %c0_i32_0 : i32, i32
  }
  func.func @transform_2(%arg0: i32, %arg1: i32) -> (i32, i32) {
    %c0_i32 = arith.constant 0 : i32
    %c0_i32_0 = arith.constant 0 : i32
    %c0_i32_1 = arith.constant 0 : i32
    return %c0_i32, %c0_i32_0 : i32, i32
  }
  func.func @transform_3(%arg0: i32, %arg1: i32) -> (i32, i32, i32) {
    %c0_i32 = arith.constant 0 : i32
    %c0_i32_0 = arith.constant 0 : i32
    %c0_i32_1 = arith.constant 0 : i32
    return %arg0, %c0_i32, %c0_i32_0 : i32, i32, i32
  }
}

</mosaic_0001>

<llo_original>
// kernel: tpu_custom_call.1
$region0: #{tpu_custom_call.1}
  #allocation0 [shape = 'u32[]', space=smem, size = 0x4, offset = 0x4, fixed_abs, tag = 'smem constant byte address 0x4 - core index']
  #allocation1 [shape = 'u32[144,128]{1,0:T(1,128)}', space=vmem, size = 0x12000, scoped, tag = 'internal scratch']
  %s0 = inlined_call_operand.hbm [shape: f32[4,2,8,256], index: 0, kind: input, shape index: {}]
  %s1 = inlined_call_operand.vmem [shape: bf16[64,32], index: 1, kind: input, shape index: {}]
  %s2 = inlined_call_operand.vmem [shape: f32[64,1], index: 2, kind: input, shape index: {}]
  %s3 = inlined_call_operand.vmem [shape: f32[2,64,1], index: 3, kind: output, shape index: {}]
  %s4 = sld [smem:[#allocation0]]
  $region53: #{tpu_custom_call.1} parent=0
    _
  %s6 = ssub.s32 1, %s4
  %s7 = scalar_select 0, %s6, %s4
  $region1: #{tpu_custom_call.1} parent=0
    #allocation2 [shape = 'u8[65536]{0}', space=vmem, size = 0x10000, scoped, tag = 'input window, operand 0']
    #allocation3 [shape = 's32[2]{0}', space=sflag, size = 0x8, scoped, tag = 'scoped memory for tpu_custom_call.1']
    %8 = vsyncpa [#allocation3], 0
    %s9 = scalar_lea.sflag [#allocation3], 1
    %10 = vsyncpa %s9, 0
    loop: start=0, step=1, limit=4
    $region2: #{tpu_custom_call.1} parent=1 // loop_pre_header
      _
    $region3: #{tpu_custom_call.1} parent=1 // loop_header
      %s12 = sphi 0, %s16
      %p13 = scmp.ge.s32.totalorder %s12, 4
      %s19 = sphi 0, %s31
      %s20 = sphi 0, %s27
      %s21 = sphi 0, %s19
      %s22 = sphi 0, %s20
      %s23 = sphi 0, %s21
      %s24 = sphi 0, %s22
      %s36 = sphi 0, %s38
      %s39 = sphi 0, %s36
      %s40 = sphi 0, %s39
      %s56 = sphi 0, %s40
      %s60 = sphi 0, %s60
      %s62 = sphi 0, %s60
      %s63 = sphi 0, %s62
      %s77 = sphi 0, %s63
      %s81 = sphi 0, %s81
      %s83 = sphi 0, %s81
      %s84 = sphi 0, %s83
      %s98 = sphi 0, %s84
      %s104 = sphi 0, %s106
      %s107 = sphi 0, %s104
      %s108 = sphi 0, %s107
      %s124 = sphi 0, %s108
    $region4: #{tpu_custom_call.1} parent=1 // loop_header_branch
      %15 = sbr.rel (%p13) target = $region8
    $region5: #{tpu_custom_call.1} parent=1 // loop_body
      %s17 = ssub.s32 %s12, 1
      %s18 = ssub.s32 %s12, 2
      %s25 = sadd.s32 1, %s20
      %p26 = scmp.ge.s32.totalorder %s25, 1
      %s27 = scalar_select %p26, 0, %s25
      %s28 = sadd.s32 1, %s19
      %s29 = scalar_select %p26, %s28, %s19
      %p30 = scmp.ge.s32.totalorder %s29, 2
      %s31 = scalar_select %p30, 0, %s29
      %s32 = ssub.s32 %s19, %s31
      %s33 = ssub.s32 %s20, %s27
      %s34 = sor.u32 %s32, %s33
      %p35 = scmp.eq.s32.totalorder %s34, 0
      %s37 = sadd.s32 %s36, 1
      %s38 = scalar_select %p35, %s36, %s37
      %p41 = pneg %p35
      %p42 = scmp.eq.s32.totalorder %s12, 1
      %p43 = por %p41, %p42
      %p44 = scmp.ne.s32.totalorder %s36, %s39
      %p45 = scmp.eq.s32.totalorder %s12, 0
      %p46 = por %p44, %p45
      %p47 = scmp.ne.s32.totalorder %s36, %s39
      %p48 = scmp.eq.s32.totalorder %s17, 1
      %p49 = por %p47, %p48
      %p50 = scmp.ne.s32.totalorder %s39, %s40
      %p51 = scmp.eq.s32.totalorder %s17, 0
      %p52 = por %p50, %p51
      %p53 = scmp.ne.s32.totalorder %s39, %s40
      %p54 = scmp.eq.s32.totalorder %s18, 1
      %p55 = por %p53, %p54
      %p57 = scmp.ne.s32.totalorder %s40, %s56
      %p58 = scmp.eq.s32.totalorder %s18, 0
      %p59 = por %p57, %p58
      %s61 = sadd.s32 %s60, 1
      %p64 = scmp.eq.s32.totalorder %s12, 1
      %p65 = scmp.ne.s32.totalorder %s60, %s62
      %p66 = scmp.eq.s32.totalorder %s12, 0
      %p67 = por %p65, %p66
      %p68 = scmp.ne.s32.totalorder %s60, %s62
      %p69 = scmp.eq.s32.totalorder %s17, 1
      %p70 = por %p68, %p69
      %p71 = scmp.ne.s32.totalorder %s62, %s63
      %p72 = scmp.eq.s32.totalorder %s17, 0
      %p73 = por %p71, %p72
      %p74 = scmp.ne.s32.totalorder %s62, %s63
      %p75 = scmp.eq.s32.totalorder %s18, 1
      %p76 = por %p74, %p75
      %p78 = scmp.ne.s32.totalorder %s63, %s77
      %p79 = scmp.eq.s32.totalorder %s18, 0
      %p80 = por %p78, %p79
      %s82 = sadd.s32 %s81, 1
      %p85 = scmp.eq.s32.totalorder %s12, 1
      %p86 = scmp.ne.s32.totalorder %s81, %s83
      %p87 = scmp.eq.s32.totalorder %s12, 0
      %p88 = por %p86, %p87
      %p89 = scmp.ne.s32.totalorder %s81, %s83
      %p90 = scmp.eq.s32.totalorder %s17, 1
      %p91 = por %p89, %p90
      %p92 = scmp.ne.s32.totalorder %s83, %s84
      %p93 = scmp.eq.s32.totalorder %s17, 0
      %p94 = por %p92, %p93
      %p95 = scmp.ne.s32.totalorder %s83, %s84
      %p96 = scmp.eq.s32.totalorder %s18, 1
      %p97 = por %p95, %p96
      %p99 = scmp.ne.s32.totalorder %s84, %s98
      %p100 = scmp.eq.s32.totalorder %s18, 0
      %p101 = por %p99, %p100
      %s102 = ssub.s32 %s19, %s31
      %p103 = scmp.eq.s32.totalorder %s102, 0
      %s105 = sadd.s32 %s104, 1
      %s106 = scalar_select %p103, %s104, %s105
      %p109 = pneg %p103
      %p110 = scmp.eq.s32.totalorder %s12, 1
      %p111 = por %p109, %p110
      %p112 = scmp.ne.s32.totalorder %s104, %s107
      %p113 = scmp.eq.s32.totalorder %s12, 0
      %p114 = por %p112, %p113
      %p115 = scmp.ne.s32.totalorder %s104, %s107
      %p116 = scmp.eq.s32.totalorder %s17, 1
      %p117 = por %p115, %p116
      %p118 = scmp.ne.s32.totalorder %s107, %s108
      %p119 = scmp.eq.s32.totalorder %s17, 0
      %p120 = por %p118, %p119
      %p121 = scmp.ne.s32.totalorder %s107, %s108
      %p122 = scmp.eq.s32.totalorder %s18, 1
      %p123 = por %p121, %p122
      %p125 = scmp.ne.s32.totalorder %s108, %s124
      %p126 = scmp.eq.s32.totalorder %s18, 0
      %p127 = por %p125, %p126
      %p128 = scmp.le.s32.totalorder 1, %s12
      %p129 = scmp.lt.s32.totalorder %s12, 3
      %p130 = pnand %p128, %p129
      %p131 = pneg %p130
      // Predicated region
      $region9: #{tpu_custom_call.1} parent=5 // pred_check
        _
      $region10: #{tpu_custom_call.1} parent=5 // pred_check_branch
        %133 = sbr.rel (%p130) target = $region12
      $region11: #{tpu_custom_call.1} parent=5 // pred_region
        %s134 = ssub.s32 %s12, 1
        // Predicated region
        $region13: #{tpu_custom_call.1} parent=11 // pred_check
          %p135 = pneg %p73
        $region14: #{tpu_custom_call.1} parent=11 // pred_check_branch
          %137 = sbr.rel (%p135) target = $region16
        $region15: #{tpu_custom_call.1} parent=11 // pred_region
          _
        $region16: #{tpu_custom_call.1} parent=11 // pred_fallthru
          _
        // Predicated region
        $region17: #{tpu_custom_call.1} parent=11 // pred_check
          %p138 = pneg %p94
        $region18: #{tpu_custom_call.1} parent=11 // pred_check_branch
          %140 = sbr.rel (%p138) target = $region20
        $region19: #{tpu_custom_call.1} parent=11 // pred_region
          _
        $region20: #{tpu_custom_call.1} parent=11 // pred_fallthru
          _
      $region12: #{tpu_custom_call.1} parent=5 // pred_fallthru
        _
      %p141 = scmp.lt.s32.totalorder %s12, 2
      // Predicated region
      $region21: #{tpu_custom_call.1} parent=5 // pred_check
        %p142 = pneg %p141
      $region22: #{tpu_custom_call.1} parent=5 // pred_check_branch
        %144 = sbr.rel (%p142) target = $region24
      $region23: #{tpu_custom_call.1} parent=5 // pred_region
        // Predicated region
        $region25: #{tpu_custom_call.1} parent=23 // pred_check
          %p145 = pneg %p46
        $region26: #{tpu_custom_call.1} parent=23 // pred_check_branch
          %147 = sbr.rel (%p145) target = $region28
        $region27: #{tpu_custom_call.1} parent=23 // pred_region
          %s148 = sand.u32 %s36, 1
          %s149 = scalar_lea.sflag [#allocation3], %s148
          %s150 = sand.u32 %s36, 1
          %s151 = smul.addr %s150, 64
          %s152 = scalar_lea.vmem [#allocation2], %s151
          %s153 = smul.u32 2, %s20
          %s155 = ssub.s32 1024, 1024
          %156 = vsyncadd %s149, %s155
          %s157 = smul.addr %s19, 2
          %s158 = sadd.s32 %s153, %s157
          %s159 = smul.addr %s158, 128
          %s160 = scalar_lea.hbm %s0, %s159
          %s161 = sshll.u32 %s152, 4
          %s162 = int_to_ptr.vmem [resolvable:$true] %s161
          %167 = dma.hbm_to_vmem [thread:$0]  %s160, 1024, %s162, %s149, 512, 256, 16
        $region28: #{tpu_custom_call.1} parent=23 // pred_fallthru
          _
      $region24: #{tpu_custom_call.1} parent=5 // pred_fallthru
        _
      %p168 = scmp.le.s32.totalorder 1, %s12
      %p169 = scmp.lt.s32.totalorder %s12, 3
      %p170 = pnand %p168, %p169
      %p171 = pneg %p170
      // Predicated region
      $region29: #{tpu_custom_call.1} parent=5 // pred_check
        _
      $region30: #{tpu_custom_call.1} parent=5 // pred_check_branch
        %173 = sbr.rel (%p170) target = $region32
      $region31: #{tpu_custom_call.1} parent=5 // pred_region
        %s174 = ssub.s32 %s12, 1
        %s175 = sand.u32 %s39, 1
        %s176 = scalar_lea.sflag [#allocation3], %s175
        %s177 = sand.u32 %s39, 1
        %s178 = smul.addr %s177, 64
        %s179 = scalar_lea.vmem [#allocation2], %s178
        // Predicated region
        $region33: #{tpu_custom_call.1} parent=31 // pred_check
          %p180 = pneg %p52
        $region34: #{tpu_custom_call.1} parent=31 // pred_check_branch
          %182 = sbr.rel (%p180) target = $region36
        $region35: #{tpu_custom_call.1} parent=31 // pred_region
          %183 = dma.done %s176, 1024
        $region36: #{tpu_custom_call.1} parent=31 // pred_fallthru
          _
        %s184 = sand.u32 %s39, 1
        %s185 = scalar_lea.sflag [#allocation3], %s184
        %s186 = sand.u32 %s39, 1
        %s187 = smul.addr %s186, 64
        %s188 = scalar_lea.vmem [#allocation2], %s187
        %p189 = pneg %p52
        %p190 = pneg %p49
        %p191 = pneg %p73
        %p192 = pneg %p70
        %p193 = pneg %p94
        %p194 = pneg %p91
        %p195 = pneg %p120
        %p196 = pneg %p117
        %p197 = scmp.lt.s32.totalorder %s21, 1
        %s198 = scalar_select %p197, %s21, 1
        %s199 = smul.addr %s198, 8
        %s200 = smul.addr %s199, 8
        %s201 = scalar_lea.vmem %s3, %s200
        %s202 = smul.u32 2, %s22
        %p203 = scmp.lt.s32.totalorder %s21, 1
        %s204 = scalar_select %p203, %s21, 1
        %s205 = smul.addr %s204, 8
        %s206 = smul.addr %s205, 8
        %s207 = scalar_lea.vmem %s3, %s206
        %p209 = scmp.eq.s32.totalorder %s22, 0
        // Predicated region
        $region37: #{tpu_custom_call.1} parent=31 // pred_check
          %p210 = pneg %p209
        $region38: #{tpu_custom_call.1} parent=31 // pred_check_branch
          %212 = sbr.rel (%p210) target = $region40
        $region39: #{tpu_custom_call.1} parent=31 // pred_region
          %vm213 = vcmask 7168
          %214 = vst.msk [vmem:[%s207] sm:$0xff] %vm213, 0.0
          %215 = vst.msk [vmem:[%s207 + $0x8] sm:$0xff] %vm213, 0.0
          %216 = vst.msk [vmem:[%s207 + $0x10] sm:$0xff] %vm213, 0.0
          %217 = vst.msk [vmem:[%s207 + $0x18] sm:$0xff] %vm213, 0.0
          %218 = vst.msk [vmem:[%s207 + $0x20] sm:$0xff] %vm213, 0.0
          %219 = vst.msk [vmem:[%s207 + $0x28] sm:$0xff] %vm213, 0.0
          %220 = vst.msk [vmem:[%s207 + $0x30] sm:$0xff] %vm213, 0.0
          %221 = vst.msk [vmem:[%s207 + $0x38] sm:$0xff] %vm213, 0.0
        $region40: #{tpu_custom_call.1} parent=31 // pred_fallthru
          _
        %v222 = vld [vmem:[%s179] sm:$0xff]
        %v223 = vld [vmem:[%s179 + $0x8] sm:$0xff]
        %v224 = vld [vmem:[%s179 + $0x10] sm:$0xff]
        %v225 = vld [vmem:[%s179 + $0x18] sm:$0xff]
        %v226 = vld [vmem:[%s179 + $0x20] sm:$0xff]
        %v227 = vld [vmem:[%s179 + $0x28] sm:$0xff]
        %v228 = vld [vmem:[%s179 + $0x30] sm:$0xff]
        %v229 = vld [vmem:[%s179 + $0x38] sm:$0xff]
        %v230 = vpack.c.bf16 %v224, %v222
        %v231 = vpack.c.bf16 %v225, %v223
        %v232 = vpack.c.bf16 %v228, %v226
        %v233 = vpack.c.bf16 %v229, %v227
        %v234 = vld [vmem:[%s1] sm:$0xf]
        %v235 = vld [vmem:[%s1 + $0x4] sm:$0xf]
        %v236 = vld [vmem:[%s1 + $0x8] sm:$0xf]
        %v237 = vld [vmem:[%s1 + $0xc] sm:$0xf]
        %v238 = vld [vmem:[%s1 + $0x10] sm:$0xf]
        %v239 = vld [vmem:[%s1 + $0x14] sm:$0xf]
        %v240 = vld [vmem:[%s1 + $0x18] sm:$0xf]
        %v241 = vld [vmem:[%s1 + $0x1c] sm:$0xf]
        %v242 = vld [vmem:[%s2] sm:$0xff]
        %v243 = vld [vmem:[%s2 + $0x8] sm:$0xff]
        %v244 = vld [vmem:[%s2 + $0x10] sm:$0xff]
        %v245 = vld [vmem:[%s2 + $0x18] sm:$0xff]
        %v246 = vld [vmem:[%s2 + $0x20] sm:$0xff]
        %v247 = vld [vmem:[%s2 + $0x28] sm:$0xff]
        %v248 = vld [vmem:[%s2 + $0x30] sm:$0xff]
        %v249 = vld [vmem:[%s2 + $0x38] sm:$0xff]
        %251 = vset.pattern.permute.xlu0 0
        %252 = vperm.xlu0 %251, %v242
        %v253 = vpop.permute.xlu0 %252
        %256 = vset.pattern.permute.xlu0 0
        %257 = vperm.xlu0 %256, %v243
        %v258 = vpop.permute.xlu0 %257
        %261 = vset.pattern.permute.xlu0 0
        %262 = vperm.xlu0 %261, %v244
        %v263 = vpop.permute.xlu0 %262
        %266 = vset.pattern.permute.xlu0 0
        %267 = vperm.xlu0 %266, %v245
        %v268 = vpop.permute.xlu0 %267
        %271 = vset.pattern.permute.xlu0 0
        %272 = vperm.xlu0 %271, %v246
        %v273 = vpop.permute.xlu0 %272
        %276 = vset.pattern.permute.xlu0 0
        %277 = vperm.xlu0 %276, %v247
        %v278 = vpop.permute.xlu0 %277
        %281 = vset.pattern.permute.xlu0 0
        %282 = vperm.xlu0 %281, %v248
        %v283 = vpop.permute.xlu0 %282
        %286 = vset.pattern.permute.xlu0 0
        %287 = vperm.xlu0 %286, %v249
        %v288 = vpop.permute.xlu0 %287
        %v298 = vunpack.c.l.b16 %v234
        %v299 = vunpack.c.l.b16 %v235
        %v300 = vunpack.c.l.b16 %v236
        %v301 = vunpack.c.l.b16 %v237
        %v302 = vunpack.c.l.b16 %v238
        %v303 = vunpack.c.l.b16 %v239
        %v304 = vunpack.c.l.b16 %v240
        %v305 = vunpack.c.l.b16 %v241
        %v306 = vpack.c.b16 %v299, %v298
        %v307 = vpack.c.b16 %v301, %v300
        %v308 = vpack.c.b16 %v303, %v302
        %v309 = vpack.c.b16 %v305, %v304
        %vm310 = vcmask 261120
        %v312 = vsel %vm310, %v306, 0
        %v315 = vsel %vm310, %v307, 0
        %v318 = vsel %vm310, %v308, 0
        %v321 = vsel %vm310, %v309, 0
        %323 = vmatprep.subr.bf16.mxu0 0
        %324 = vmatpush1.bf16.msra.mxu0 0
        %325 = vmatprep.subr.bf16.mxu0 0
        %326 = vmatpush1.bf16.msra.mxu0 0
        %327 = vmatprep.subr.bf16.mxu0 0
        %328 = vmatpush1.bf16.msra.mxu0 0
        %329 = vmatprep.subr.bf16.mxu0 0
        %330 = vmatpush1.bf16.msra.mxu0 0
        %331 = vmatprep.subr.bf16.mxu0 0
        %332 = vmatpush1.bf16.msra.mxu0 0
        %333 = vmatprep.subr.bf16.mxu0 0
        %334 = vmatpush1.bf16.msra.mxu0 0
        %335 = vmatprep.subr.bf16.mxu0 %v233
        %336 = vmatpush1.bf16.msra.mxu0 %v232
        %337 = vmatprep.subr.bf16.mxu0 %v231
        %338 = vmatpush1.bf16.msra.mxu0 %v230
        %339 = vmatprep.subr.bf16.mxu0 0
        %340 = vmatpush2.bf16.msra.mxu0 0
        %341 = vmatprep.subr.bf16.mxu0 0
        %342 = vmatpush2.bf16.msra.mxu0 0
        %343 = vmatprep.subr.bf16.mxu0 0
        %344 = vmatpush2.bf16.msra.mxu0 0
        %345 = vmatprep.subr.bf16.mxu0 0
        %346 = vmatpush2.bf16.msra.mxu0 0
        %347 = vmatprep.subr.bf16.mxu0 0
        %348 = vmatpush2.bf16.msra.mxu0 0
        %349 = vmatprep.subr.bf16.mxu0 0
        %350 = vmatpush2.bf16.msra.mxu0 0
        %351 = vmatprep.subr.bf16.mxu0 0
        %352 = vmatpush2.bf16.msra.mxu0 0
        %353 = vmatprep.subr.bf16.mxu0 0
        %354 = vmatpush2.bf16.msra.mxu0 0
        %355 = vmatprep.mubr.bf16.mxu0 0
        %356 = vmatmul.mubr.bf16.gmra.mxu0 %v312
        %v357 = vpop.f32.mrf.mxu0
        %v358 = vadd.f32 %v253, %v357
        %v359 = vpop.f32.mrf.mxu0
        %v360 = vadd.f32 %v253, %v359
        %v361 = vpop.f32.mrf.mxu0
        %v362 = vadd.f32 %v258, %v361
        %v363 = vpop.f32.mrf.mxu0
        %v364 = vadd.f32 %v258, %v363
        %365 = vmatprep.mubr.bf16.mxu0 0
        %366 = vmatmul.mubr.bf16.gmra.mxu0 %v315
        %v367 = vpop.f32.mrf.mxu0
        %v368 = vadd.f32 %v263, %v367
        %v369 = vpop.f32.mrf.mxu0
        %v370 = vadd.f32 %v263, %v369
        %v371 = vpop.f32.mrf.mxu0
        %v372 = vadd.f32 %v268, %v371
        %v373 = vpop.f32.mrf.mxu0
        %v374 = vadd.f32 %v268, %v373
        %375 = vmatprep.mubr.bf16.mxu0 0
        %376 = vmatmul.mubr.bf16.gmra.mxu0 %v318
        %v377 = vpop.f32.mrf.mxu0
        %v378 = vadd.f32 %v273, %v377
        %v379 = vpop.f32.mrf.mxu0
        %v380 = vadd.f32 %v273, %v379
        %v381 = vpop.f32.mrf.mxu0
        %v382 = vadd.f32 %v278, %v381
        %v383 = vpop.f32.mrf.mxu0
        %v384 = vadd.f32 %v278, %v383
        %385 = vmatprep.mubr.bf16.mxu0 0
        %386 = vmatmul.mubr.bf16.gmra.mxu0 %v321
        %v387 = vpop.f32.mrf.mxu0
        %v388 = vadd.f32 %v283, %v387
        %v389 = vpop.f32.mrf.mxu0
        %v390 = vadd.f32 %v283, %v389
        %v391 = vpop.f32.mrf.mxu0
        %v392 = vadd.f32 %v288, %v391
        %v393 = vpop.f32.mrf.mxu0
        %v394 = vadd.f32 %v288, %v393
        %395 = vdwg.mxu0
        %v396 = vmax.f32 %v358, 0.0
        %v397 = vmax.f32 %v360, 0.0
        %v398 = vmax.f32 %v362, 0.0
        %v399 = vmax.f32 %v364, 0.0
        %v400 = vmax.f32 %v368, 0.0
        %v401 = vmax.f32 %v370, 0.0
        %v402 = vmax.f32 %v372, 0.0
        %v403 = vmax.f32 %v374, 0.0
        %v404 = vmax.f32 %v378, 0.0
        %v405 = vmax.f32 %v380, 0.0
        %v406 = vmax.f32 %v382, 0.0
        %v407 = vmax.f32 %v384, 0.0
        %v408 = vmax.f32 %v388, 0.0
        %v409 = vmax.f32 %v390, 0.0
        %v410 = vmax.f32 %v392, 0.0
        %v411 = vmax.f32 %v394, 0.0
        %v412 = vadd.f32 %v396, %v397
        %413 = vadd.xlane.f32.xlu0 %v412
        %v414 = vpop.xlane.xlu0 %413
        %v415 = vadd.f32 %v398, %v399
        %416 = vadd.xlane.f32.xlu0 %v415
        %v417 = vpop.xlane.xlu0 %416
        %v418 = vadd.f32 %v400, %v401
        %419 = vadd.xlane.f32.xlu0 %v418
        %v420 = vpop.xlane.xlu0 %419
        %v421 = vadd.f32 %v402, %v403
        %422 = vadd.xlane.f32.xlu0 %v421
        %v423 = vpop.xlane.xlu0 %422
        %v424 = vadd.f32 %v404, %v405
        %425 = vadd.xlane.f32.xlu0 %v424
        %v426 = vpop.xlane.xlu0 %425
        %v427 = vadd.f32 %v406, %v407
        %428 = vadd.xlane.f32.xlu0 %v427
        %v429 = vpop.xlane.xlu0 %428
        %v430 = vadd.f32 %v408, %v409
        %431 = vadd.xlane.f32.xlu0 %v430
        %v432 = vpop.xlane.xlu0 %431
        %v433 = vadd.f32 %v410, %v411
        %434 = vadd.xlane.f32.xlu0 %v433
        %v435 = vpop.xlane.xlu0 %434
        %v436 = vld [vmem:[%s207] sm:$0xff]
        %v437 = vld [vmem:[%s207 + $0x8] sm:$0xff]
        %v438 = vld [vmem:[%s207 + $0x10] sm:$0xff]
        %v439 = vld [vmem:[%s207 + $0x18] sm:$0xff]
        %v440 = vld [vmem:[%s207 + $0x20] sm:$0xff]
        %v441 = vld [vmem:[%s207 + $0x28] sm:$0xff]
        %v442 = vld [vmem:[%s207 + $0x30] sm:$0xff]
        %v443 = vld [vmem:[%s207 + $0x38] sm:$0xff]
        %v444 = vadd.f32 %v436, %v414
        %v445 = vadd.f32 %v437, %v417
        %v446 = vadd.f32 %v438, %v420
        %v447 = vadd.f32 %v439, %v423
        %v448 = vadd.f32 %v440, %v426
        %v449 = vadd.f32 %v441, %v429
        %v450 = vadd.f32 %v442, %v432
        %v451 = vadd.f32 %v443, %v435
        %vm452 = vcmask 7168
        %453 = vst.msk [vmem:[%s207] sm:$0xff] %vm452, %v444
        %454 = vst.msk [vmem:[%s207 + $0x8] sm:$0xff] %vm452, %v445
        %455 = vst.msk [vmem:[%s207 + $0x10] sm:$0xff] %vm452, %v446
        %456 = vst.msk [vmem:[%s207 + $0x18] sm:$0xff] %vm452, %v447
        %457 = vst.msk [vmem:[%s207 + $0x20] sm:$0xff] %vm452, %v448
        %458 = vst.msk [vmem:[%s207 + $0x28] sm:$0xff] %vm452, %v449
        %459 = vst.msk [vmem:[%s207 + $0x30] sm:$0xff] %vm452, %v450
        %460 = vst.msk [vmem:[%s207 + $0x38] sm:$0xff] %vm452, %v451
        %p461 = scmp.lt.s32.totalorder %s21, 1
        %s462 = scalar_select %p461, %s21, 1
        %s463 = smul.addr %s462, 8
        %s464 = smul.addr %s463, 8
        %s465 = scalar_lea.vmem %s3, %s464
        // Predicated region
        $region41: #{tpu_custom_call.1} parent=31 // pred_check
          %p466 = pneg %p117
        $region42: #{tpu_custom_call.1} parent=31 // pred_check_branch
          %468 = sbr.rel (%p466) target = $region44
        $region43: #{tpu_custom_call.1} parent=31 // pred_region
          _
        $region44: #{tpu_custom_call.1} parent=31 // pred_fallthru
          _
      $region32: #{tpu_custom_call.1} parent=5 // pred_fallthru
        _
      %p469 = scmp.le.s32.totalorder 2, %s12
      // Predicated region
      $region45: #{tpu_custom_call.1} parent=5 // pred_check
        %p470 = pneg %p469
      $region46: #{tpu_custom_call.1} parent=5 // pred_check_branch
        %472 = sbr.rel (%p470) target = $region48
      $region47: #{tpu_custom_call.1} parent=5 // pred_region
        %s473 = ssub.s32 %s12, 2
        // Predicated region
        $region49: #{tpu_custom_call.1} parent=47 // pred_check
          %p474 = pneg %p123
        $region50: #{tpu_custom_call.1} parent=47 // pred_check_branch
          %476 = sbr.rel (%p474) target = $region52
        $region51: #{tpu_custom_call.1} parent=47 // pred_region
          %p477 = scmp.lt.s32.totalorder %s23, 1
          %s478 = scalar_select %p477, %s23, 1
          %s479 = smul.addr %s478, 8
          %s480 = smul.addr %s479, 8
          %s481 = scalar_lea.vmem %s3, %s480
        $region52: #{tpu_custom_call.1} parent=47 // pred_fallthru
          _
      $region48: #{tpu_custom_call.1} parent=5 // pred_fallthru
        _
    $region6: #{tpu_custom_call.1} parent=1 // loop_footer
      %s16 = sadd.s32 1, %s12
    $region7: #{tpu_custom_call.1} parent=1 // loop_footer_branch
      %11 = sbr.rel target = $region3
    $region8: #{tpu_custom_call.1} parent=1 // loop_exit
      _
    %482 = vsyncpa [#allocation3], 1
    %s483 = scalar_lea.sflag [#allocation3], 1
    %484 = vsyncpa %s483, 1

</llo_original>
